<compile_context>
chip_gen: v5e
topology: v5e:2x2
jax: 0.10.0
libtpu: 0.0.40
codegen_flags: <defaults>
</compile_context>

<pallas_src>
import math

import jax
import jax.numpy as jnp
from jax.experimental import pallas as pl
from jax.experimental.pallas import tpu as pltpu


# ----------------------------- kernel ---------------------------------------
def timestep_embeddings_kernel(ts_ref, freqs_ref, w1_ref, b1_ref, w2_ref,
                               b2_ref, o_ref):
    # ---- sinusoidal time projection (TemporalTimesteps) ----
    t = ts_ref[...]                                   # [B_pad, 1]    f32
    ang = t * freqs_ref[...]                          # [B_pad, half] f32
    # flip_sin_to_cos=True -> [cos | sin]; half is lane-aligned (multiple of
    # 128 at SD3/Flux sizes), so the concat is just vreg placement.
    emb = jnp.concatenate([jnp.cos(ang), jnp.sin(ang)], axis=-1)  # [B, dim_in]

    # ---- timestep_embedder: Linear -> SiLU -> Linear ----
    # bf16 operands on the MXU, f32 accumulation; bias add + SiLU stay f32.
    h = jnp.dot(emb.astype(w1_ref.dtype), w1_ref[...],
                preferred_element_type=jnp.float32) + b1_ref[...]
    h = h * jax.nn.sigmoid(h)                         # SiLU in f32 (VPU/EUP)
    # w2_ref / b2_ref / o_ref may be a column block (dual-TC split); the math
    # is identical, each grid step produces its own output-column slab.
    y = jnp.dot(h.astype(w2_ref.dtype), w2_ref[...],
                preferred_element_type=jnp.float32) + b2_ref[...]
    o_ref[...] = y.astype(o_ref.dtype)


# ----------------------------- helpers ---------------------------------------
def _num_tensorcores():
    """Best-effort TensorCore count (2 on v7x, 1 on v5e/v6e). Defaults to 1."""
    try:
        info = pltpu.get_tpu_info()
        for name in ("num_cores", "tensorcore_count", "num_tensorcores",
                     "core_count"):
            v = getattr(info, name, None)
            if isinstance(v, int) and v > 0:
                return v
    except Exception:
        pass
    try:
        dev = jax.devices()[0]
        v = getattr(dev, "num_cores", None)
        if isinstance(v, int) and v > 0:
            return v
        kind = str(getattr(dev, "device_kind", "")).lower()
        if "v7" in kind:
            return 2
    except Exception:
        pass
    return 1


def _vmem_capacity_bytes():
    """Per-core VMEM capacity; conservative 64 MiB (v7x) if unknown."""
    try:
        cap = getattr(pltpu.get_tpu_info(), "vmem_capacity_bytes", None)
        if isinstance(cap, int) and cap > 0:
            return cap
    except Exception:
        pass
    return 64 << 20


def prepare_timestep_embedding_params(w1, b1, w2, b2,
                                      matmul_dtype=jnp.bfloat16):
    """Cast / lay out the parameters ONCE at model-load time.

    Reuse the returned dict for every denoising step so the per-call path
    never re-reads and re-converts the f32 master weights from HBM.
    w1: [dim_in, dim_out], w2: [dim_out, dim_out] (input-major, i.e.
    transposed from PyTorch's [out, in]).  Biases stay f32.
    """
    dim_in, dim_out = w1.shape
    half = dim_in // 2
    freqs = jnp.exp(
        -math.log(10000.0) * jnp.arange(half, dtype=jnp.float32) / float(half)
    ).reshape(1, half)
    return dict(
        w1=jnp.asarray(w1, matmul_dtype),
        w2=jnp.asarray(w2, matmul_dtype),
        b1=jnp.asarray(b1, jnp.float32).reshape(1, dim_out),
        b2=jnp.asarray(b2, jnp.float32).reshape(1, dim_out),
        freqs=freqs,
    )


# ----------------------------- wrapper ---------------------------------------
def timestep_embeddings(timestep, params, dtype=jnp.float32,
                        num_tensorcores=None):
    """timestep: [B] float; params: output of prepare_timestep_embedding_params.
    Returns [B, dim_out] in `dtype`.

    Perf note: this kernel is weight-DMA bound — batch as many timesteps as
    possible (all schedule steps x CFG pairs) into ONE call so the weights are
    read from HBM once per run instead of once per step.
    """
    w1, b1 = params["w1"], params["b1"]
    w2, b2 = params["w2"], params["b2"]
    freqs = params["freqs"]
    dim_in, dim_out = w1.shape
    half = dim_in // 2
    m_itemsize = jnp.dtype(w1.dtype).itemsize
    o_itemsize = jnp.dtype(dtype).itemsize

    # Pad the batch so the MXU LHS / output stores are full-tile and unmasked:
    # bf16 packs two rows per sublane -> multiple of 16; f32 -> multiple of 8.
    B = timestep.shape[0]
    row_align = 16 if m_itemsize < 4 else 8
    B_pad = max(row_align, -(-B // row_align) * row_align)
    ts2d = timestep.astype(jnp.float32).reshape(B, 1)
    if B_pad != B:
        ts2d = jnp.pad(ts2d, ((0, B_pad - B), (0, 0)))

    # Dual-TC (v7x) column split of the dominant W2 / output; single step on
    # single-TC chips (v5e/v6e) to avoid a duplicated W1 DMA + extra grid step.
    if num_tensorcores is None:
        num_tensorcores = _num_tensorcores()
    n_split = 2 if (num_tensorcores >= 2 and dim_out % 256 == 0) else 1
    n_cols = dim_out // n_split

    # VMEM budget: 2x the per-step block footprint (double-buffer worst case)
    # + slack, clamped generation-aware below the physical per-core capacity.
    block_bytes = (
        B_pad * 1 * 4                       # timesteps
        + half * 4                          # freqs
        + dim_in * dim_out * m_itemsize     # w1
        + dim_out * 4                       # b1
        + dim_out * n_cols * m_itemsize     # w2 column block
        + n_cols * 4                        # b2 column block
        + B_pad * n_cols * o_itemsize       # out column block
        + B_pad * (dim_in + 2 * dim_out) * 4  # f32 activations / accumulators
    )
    vmem_needed = 2 * block_bytes + (2 << 20)
    vmem_cap = _vmem_capacity_bytes()
    vmem_limit = int(min(max(vmem_needed, 4 << 20), int(0.85 * vmem_cap)))

    full = lambda shape: pl.BlockSpec(shape, lambda j: (0, 0))
    split = lambda shape: pl.BlockSpec(shape, lambda j: (0, j))

    out = pl.pallas_call(
        timestep_embeddings_kernel,
        out_shape=jax.ShapeDtypeStruct((B_pad, dim_out), dtype),
        grid=(n_split,),
        in_specs=[
            full((B_pad, 1)),            # timesteps        (f32)
            full((1, half)),             # freqs            (f32)
            full((dim_in, dim_out)),     # w1               (matmul_dtype)
            full((1, dim_out)),          # b1               (f32)
            split((dim_out, n_cols)),    # w2 column block  (matmul_dtype)
            split((1, n_cols)),          # b2 column block  (f32)
        ],
        out_specs=split((B_pad, n_cols)),
        compiler_params=pltpu.CompilerParams(
            dimension_semantics=("parallel",),
            vmem_limit_bytes=vmem_limit),
    )(ts2d, freqs, w1, b1, w2, b2)
    return out[:B] if B_pad != B else out


# ----------------------------- references -----------------------------------
def _sinusoid(timestep, dim_in):
    half = dim_in // 2
    freqs = jnp.exp(-math.log(10000.0)
                    * jnp.arange(half, dtype=jnp.float32) / float(half))
    ang = timestep.astype(jnp.float32)[:, None] * freqs[None, :]
    return jnp.concatenate([jnp.cos(ang), jnp.sin(ang)], axis=-1)


def _reference_f32(timestep, w1, b1, w2, b2, dtype=jnp.float32):
    # Exact module semantics (Linear layers in `dtype`).
    emb = _sinusoid(timestep, w1.shape[0]).astype(dtype)
    h = jax.nn.silu(emb @ w1.astype(dtype) + b1.astype(dtype))
    return (h @ w2.astype(dtype) + b2.astype(dtype)).astype(dtype)


def _reference_mxu(timestep, w1, b1, w2, b2, dtype=jnp.float32,
                   matmul_dtype=jnp.bfloat16):
    # Same math the kernel performs: bf16 MXU operands, f32 accumulation.
    emb = _sinusoid(timestep, w1.shape[0])
    h = jnp.dot(emb.astype(matmul_dtype), w1.astype(matmul_dtype),
                preferred_element_type=jnp.float32) + b1.astype(jnp.float32)
    h = h * jax.nn.sigmoid(h)
    y = jnp.dot(h.astype(matmul_dtype), w2.astype(matmul_dtype),
                preferred_element_type=jnp.float32) + b2.astype(jnp.float32)
    return y.astype(dtype)


if __name__ == "__main__":
    B = 8            # e.g. 4 frames x CFG pair batched into one call
    dim_in = 256
    dim_out = 256
    dtype = jnp.float32

    key = jax.random.PRNGKey(0)
    k1, k2, k3, k4, k5 = jax.random.split(key, 5)

    lim1 = 1.0 / math.sqrt(dim_in)
    lim2 = 1.0 / math.sqrt(dim_out)
    w1 = jax.random.uniform(k1, (dim_in, dim_out), jnp.float32, -lim1, lim1)
    b1 = jax.random.uniform(k2, (dim_out,), jnp.float32, -lim1, lim1)
    w2 = jax.random.uniform(k3, (dim_out, dim_out), jnp.float32, -lim2, lim2)
    b2 = jax.random.uniform(k4, (dim_out,), jnp.float32, -lim2, lim2)
    timestep = jax.random.uniform(k5, (B,), jnp.float32, 0.0, 1000.0)

    # One-time parameter preparation (model-load time), reused per call.
    params = prepare_timestep_embedding_params(w1, b1, w2, b2,
                                               matmul_dtype=jnp.bfloat16)
    params = jax.tree_util.tree_map(jax.block_until_ready, params)

    out = timestep_embeddings(timestep, params, dtype=dtype)
    out = jax.block_until_ready(out)
    assert out.shape == (B, dim_out) and out.dtype == dtype

    # Tight check vs. a reference doing the same bf16-operand / f32-acc math.
    ref_mxu = _reference_mxu(timestep, w1, b1, w2, b2, dtype=dtype)
    assert jnp.allclose(out, ref_mxu, atol=5e-3, rtol=5e-3), \
        float(jnp.max(jnp.abs(out - ref_mxu)))

    # Looser check vs. full-f32 module semantics (covers bf16 weight rounding).
    ref_f32 = _reference_f32(timestep, w1, b1, w2, b2, dtype=dtype)
    assert jnp.allclose(out, ref_f32, atol=5e-2, rtol=5e-2), \
        float(jnp.max(jnp.abs(out - ref_f32)))

    # Also exercise the explicit dual-TC column-split path (correct on any
    # chip; on single-TC it is just two sequential steps).
    out_split = jax.block_until_ready(
        timestep_embeddings(timestep, params, dtype=dtype, num_tensorcores=2))
    assert jnp.allclose(out_split, out, atol=1e-6, rtol=1e-6)

    print("KERNEL_OK")
</pallas_src>

<mosaic_0001>
module attributes {stable_mosaic.version = 11 : i64} {
  func.func @timestep_embeddings_kernel(%arg0: i32, %arg1: memref<16x1xf32, #tpu.memory_space<vmem>>, %arg2: memref<1x128xf32, #tpu.memory_space<vmem>>, %arg3: memref<256x256xbf16, #tpu.memory_space<vmem>>, %arg4: memref<1x256xf32, #tpu.memory_space<vmem>>, %arg5: memref<256x256xbf16, #tpu.memory_space<vmem>>, %arg6: memref<1x256xf32, #tpu.memory_space<vmem>>, %arg7: memref<16x256xf32, #tpu.memory_space<vmem>>) attributes {dimension_semantics = [#tpu.dimension_semantics<parallel>], iteration_bounds = array<i64: 1>, scalar_prefetch = 0 : i64, scratch_operands = 0 : i64, tpu.core_type = #tpu.core_type<tc>, window_params = [{pipeline_mode = #tpu.pipeline_mode<synchronous>, transform_indices = @transform_0, window_bounds = array<i64: 16, 1>}, {pipeline_mode = #tpu.pipeline_mode<synchronous>, transform_indices = @transform_1, window_bounds = array<i64: 1, 128>}, {pipeline_mode = #tpu.pipeline_mode<synchronous>, transform_indices = @transform_2, window_bounds = array<i64: 256, 256>}, {pipeline_mode = #tpu.pipeline_mode<synchronous>, transform_indices = @transform_3, window_bounds = array<i64: 1, 256>}, {transform_indices = @transform_4, window_bounds = array<i64: 256, 256>}, {transform_indices = @transform_5, window_bounds = array<i64: 1, 256>}, {transform_indices = @transform_6, window_bounds = array<i64: 16, 256>}]} {
    %c0 = arith.constant 0 : index
    %c0_0 = arith.constant 0 : index
    %0 = vector.load %arg1[%c0, %c0_0] : memref<16x1xf32, #tpu.memory_space<vmem>>, vector<16x1xf32>
    %c0_1 = arith.constant 0 : index
    %c0_2 = arith.constant 0 : index
    %1 = vector.load %arg2[%c0_1, %c0_2] : memref<1x128xf32, #tpu.memory_space<vmem>>, vector<1x128xf32>
    %2 = vector.broadcast %0 : vector<16x1xf32> to vector<16x128xf32>
    %3 = vector.broadcast %1 : vector<1x128xf32> to vector<16x128xf32>
    %4 = arith.mulf %2, %3 : vector<16x128xf32>
    %5 = math.cos %4 : vector<16x128xf32>
    %6 = math.sin %4 : vector<16x128xf32>
    %7 = tpu.concatenate %5, %6 in 1 : vector<16x128xf32>, vector<16x128xf32> -> vector<16x256xf32>
    %8 = arith.truncf %7 : vector<16x256xf32> to vector<16x256xbf16>
    %c0_3 = arith.constant 0 : index
    %c0_4 = arith.constant 0 : index
    %9 = vector.load %arg3[%c0_3, %c0_4] : memref<256x256xbf16, #tpu.memory_space<vmem>>, vector<256x256xbf16>
    %cst = arith.constant dense<0.000000e+00> : vector<16x256xf32>
    %10 = tpu.matmul %8, %9, %cst {dimension_numbers = #tpu.dot_dimension_numbers<[1], [0], [0], [1], [0, 0, 1, 1], [], []>} : vector<16x256xbf16>, vector<256x256xbf16>, vector<16x256xf32> -> vector<16x256xf32>
    %c0_5 = arith.constant 0 : index
    %c0_6 = arith.constant 0 : index
    %11 = vector.load %arg4[%c0_5, %c0_6] : memref<1x256xf32, #tpu.memory_space<vmem>>, vector<1x256xf32>
    %12 = vector.broadcast %11 : vector<1x256xf32> to vector<16x256xf32>
    %13 = arith.addf %10, %12 : vector<16x256xf32>
    %14 = arith.negf %13 : vector<16x256xf32>
    %15 = math.exp %14 : vector<16x256xf32>
    %cst_7 = arith.constant 1.000000e+00 : f32
    %16 = vector.broadcast %cst_7 : f32 to vector<16x256xf32>
    %17 = arith.addf %16, %15 : vector<16x256xf32>
    %18 = arith.divf %16, %17 : vector<16x256xf32>
    %19 = arith.mulf %13, %18 : vector<16x256xf32>
    %20 = arith.truncf %19 : vector<16x256xf32> to vector<16x256xbf16>
    %c0_8 = arith.constant 0 : index
    %c0_9 = arith.constant 0 : index
    %21 = vector.load %arg5[%c0_8, %c0_9] : memref<256x256xbf16, #tpu.memory_space<vmem>>, vector<256x256xbf16>
    %cst_10 = arith.constant dense<0.000000e+00> : vector<16x256xf32>
    %22 = tpu.matmul %20, %21, %cst_10 {dimension_numbers = #tpu.dot_dimension_numbers<[1], [0], [0], [1], [0, 0, 1, 1], [], []>} : vector<16x256xbf16>, vector<256x256xbf16>, vector<16x256xf32> -> vector<16x256xf32>
    %c0_11 = arith.constant 0 : index
    %c0_12 = arith.constant 0 : index
    %23 = vector.load %arg6[%c0_11, %c0_12] : memref<1x256xf32, #tpu.memory_space<vmem>>, vector<1x256xf32>
    %24 = vector.broadcast %23 : vector<1x256xf32> to vector<16x256xf32>
    %25 = arith.addf %22, %24 : vector<16x256xf32>
    %c0_13 = arith.constant 0 : index
    %c0_14 = arith.constant 0 : index
    %26 = vector.load %arg7[%c0_13, %c0_14] : memref<16x256xf32, #tpu.memory_space<vmem>>, vector<16x256xf32>
    tpu.vector_store %arg7[%c0_13, %c0_14], %25 {strides = array<i32>} : memref<16x256xf32, #tpu.memory_space<vmem>>, vector<16x256xf32>,
    return
  }
  func.func @transform_0(%arg0: i32) -> (i32, i32) {
    %c0_i32 = arith.constant 0 : i32
    %c0_i32_0 = arith.constant 0 : i32
    %c0_i32_1 = arith.constant 0 : i32
    return %c0_i32, %c0_i32_0 : i32, i32
  }
  func.func @transform_1(%arg0: i32) -> (i32, i32) {
    %c0_i32 = arith.constant 0 : i32
    %c0_i32_0 = arith.constant 0 : i32
    %c0_i32_1 = arith.constant 0 : i32
    return %c0_i32, %c0_i32_0 : i32, i32
  }
  func.func @transform_2(%arg0: i32) -> (i32, i32) {
    %c0_i32 = arith.constant 0 : i32
    %c0_i32_0 = arith.constant 0 : i32
    %c0_i32_1 = arith.constant 0 : i32
    return %c0_i32, %c0_i32_0 : i32, i32
  }
  func.func @transform_3(%arg0: i32) -> (i32, i32) {
    %c0_i32 = arith.constant 0 : i32
    %c0_i32_0 = arith.constant 0 : i32
    %c0_i32_1 = arith.constant 0 : i32
    return %c0_i32, %c0_i32_0 : i32, i32
  }
  func.func @transform_4(%arg0: i32) -> (i32, i32) {
    %c0_i32 = arith.constant 0 : i32
    %c0_i32_0 = arith.constant 0 : i32
    return %c0_i32, %arg0 : i32, i32
  }
  func.func @transform_5(%arg0: i32) -> (i32, i32) {
    %c0_i32 = arith.constant 0 : i32
    %c0_i32_0 = arith.constant 0 : i32
    return %c0_i32, %arg0 : i32, i32
  }
  func.func @transform_6(%arg0: i32) -> (i32, i32) {
    %c0_i32 = arith.constant 0 : i32
    %c0_i32_0 = arith.constant 0 : i32
    return %c0_i32, %arg0 : i32, i32
  }
}

</mosaic_0001>

<llo_original>
// kernel: tpu_custom_call.1
$region0: #{tpu_custom_call.1}
  #allocation0 [shape = 'u32[]', space=smem, size = 0x4, offset = 0x4, fixed_abs, tag = 'smem constant byte address 0x4 - core index']
  #allocation1 [shape = 'u32[72,128]{1,0:T(1,128)}', space=vmem, size = 0x9000, scoped, tag = 'internal scratch']
  %s0 = inlined_call_operand.vmem [shape: f32[16,1], index: 0, kind: input, shape index: {}]
  %s1 = inlined_call_operand.vmem [shape: f32[1,128], index: 1, kind: input, shape index: {}]
  %s2 = inlined_call_operand.hbm [shape: bf16[256,256], index: 2, kind: input, shape index: {}]
  %s3 = inlined_call_operand.vmem [shape: f32[1,256], index: 3, kind: input, shape index: {}]
  %s4 = inlined_call_operand.hbm [shape: bf16[256,256], index: 4, kind: input, shape index: {}]
  %s5 = inlined_call_operand.vmem [shape: f32[1,256], index: 5, kind: input, shape index: {}]
  %s6 = inlined_call_operand.hbm [shape: f32[16,256], index: 6, kind: output, shape index: {}]
  %s7 = sld [smem:[#allocation0]]
  $region42: #{tpu_custom_call.1} parent=0
    _
  %s9 = ssub.s32 1, %s7
  %s10 = scalar_select 0, %s9, %s7
  $region1: #{tpu_custom_call.1} parent=0
    #allocation2 [shape = 'u8[131072]{0}', space=vmem, size = 0x20000, scoped, tag = 'input window, operand 2, single buffered']
    #allocation3 [shape = 's32[1]{0}', space=sflag, size = 0x4, scoped, tag = 'scoped memory for tpu_custom_call.1']
    #allocation4 [shape = 's32[1]{0}', space=sflag, size = 0x4, scoped, tag = 'scoped memory for tpu_custom_call.1']
    #allocation5 [shape = 'u8[131072]{0}', space=vmem, size = 0x20000, scoped, tag = 'input window, operand 4, single buffered']
    #allocation6 [shape = 's32[1]{0}', space=sflag, size = 0x4, scoped, tag = 'scoped memory for tpu_custom_call.1']
    #allocation7 [shape = 'u8[16384]{0}', space=vmem, size = 0x4000, scoped, tag = 'output window, operand 0, single buffered']
    %11 = vsyncpa [#allocation3], 0
    %12 = vsyncpa [#allocation6], 0
    %13 = vsyncpa [#allocation4], 0
    // Predicated region
    $region2: #{tpu_custom_call.1} parent=1 // pred_check
      _
    $region3: #{tpu_custom_call.1} parent=1 // pred_check_branch
      %15 = sbr.rel (0) target = $region5
    $region4: #{tpu_custom_call.1} parent=1 // pred_region
      _
    $region5: #{tpu_custom_call.1} parent=1 // pred_fallthru
      _
    // Predicated region
    $region6: #{tpu_custom_call.1} parent=1 // pred_check
      _
    $region7: #{tpu_custom_call.1} parent=1 // pred_check_branch
      %17 = sbr.rel (0) target = $region9
    $region8: #{tpu_custom_call.1} parent=1 // pred_region
      _
    $region9: #{tpu_custom_call.1} parent=1 // pred_fallthru
      _
    // Predicated region
    $region10: #{tpu_custom_call.1} parent=1 // pred_check
      _
    $region11: #{tpu_custom_call.1} parent=1 // pred_check_branch
      %19 = sbr.rel (0) target = $region13
    $region12: #{tpu_custom_call.1} parent=1 // pred_region
      %21 = vsyncadd [#allocation3], 0
      %s22 = sshll.u32 %s2, 4
      %s23 = int_to_ptr.hbm [resolvable:$true] %s22
      %s24 = sshll.u32 [#allocation2], 4
      %s25 = int_to_ptr.vmem [resolvable:$true] %s24
      %30 = dma.hbm_to_vmem [thread:$0]  %s23, 4096, %s25, [#allocation3], 128, 128, 8
    $region13: #{tpu_custom_call.1} parent=1 // pred_fallthru
      _
    // Predicated region
    $region14: #{tpu_custom_call.1} parent=1 // pred_check
      _
    $region15: #{tpu_custom_call.1} parent=1 // pred_check_branch
      %32 = sbr.rel (0) target = $region17
    $region16: #{tpu_custom_call.1} parent=1 // pred_region
      _
    $region17: #{tpu_custom_call.1} parent=1 // pred_fallthru
      _
    // Predicated region
    $region18: #{tpu_custom_call.1} parent=1 // pred_check
      _
    $region19: #{tpu_custom_call.1} parent=1 // pred_check_branch
      %34 = sbr.rel (0) target = $region21
    $region20: #{tpu_custom_call.1} parent=1 // pred_region
      %36 = vsyncadd [#allocation6], 0
      %s37 = sshll.u32 %s4, 4
      %s38 = int_to_ptr.hbm [resolvable:$true] %s37
      %s39 = sshll.u32 [#allocation5], 4
      %s40 = int_to_ptr.vmem [resolvable:$true] %s39
      %45 = dma.hbm_to_vmem [thread:$0]  %s38, 4096, %s40, [#allocation6], 128, 128, 8
    $region21: #{tpu_custom_call.1} parent=1 // pred_fallthru
      _
    // Predicated region
    $region22: #{tpu_custom_call.1} parent=1 // pred_check
      _
    $region23: #{tpu_custom_call.1} parent=1 // pred_check_branch
      %47 = sbr.rel (0) target = $region25
    $region24: #{tpu_custom_call.1} parent=1 // pred_region
      _
    $region25: #{tpu_custom_call.1} parent=1 // pred_fallthru
      _
    // Predicated region
    $region26: #{tpu_custom_call.1} parent=1 // pred_check
      _
    $region27: #{tpu_custom_call.1} parent=1 // pred_check_branch
      %49 = sbr.rel (0) target = $region29
    $region28: #{tpu_custom_call.1} parent=1 // pred_region
      %51 = dma.done [#allocation3], 4096
    $region29: #{tpu_custom_call.1} parent=1 // pred_fallthru
      _
    // Predicated region
    $region30: #{tpu_custom_call.1} parent=1 // pred_check
      _
    $region31: #{tpu_custom_call.1} parent=1 // pred_check_branch
      %53 = sbr.rel (0) target = $region33
    $region32: #{tpu_custom_call.1} parent=1 // pred_region
      %55 = dma.done [#allocation6], 4096
    $region33: #{tpu_custom_call.1} parent=1 // pred_fallthru
      _
    %v56 = vld [vmem:[%s0] sm:$0xff]
    %v57 = vld [vmem:[%s0 + $0x8] sm:$0xff]
    %v58 = vld [vmem:[%s1] sm:$0x1]
    %60 = vset.pattern.permute.xlu0 0
    %61 = vperm.xlu0 %60, %v56
    %v62 = vpop.permute.xlu0 %61
    %65 = vset.pattern.permute.xlu0 0
    %66 = vperm.xlu0 %65, %v57
    %v67 = vpop.permute.xlu0 %66
    %v70 = vperm.slane %v58, 0
    %v72 = vmul.f32 %v62, %v70
    %v73 = vmul.f32 %v67, %v70
    %v74 = vand.u32 2147483647, %v72
    %vm75 = vcmp.le.f32.partialorder %v74, 0.7853982
    %vm76 = vcmp.lt.s32.totalorder %v72, 0
    %v77 = vand.u32 %v72, 2139095040
    %v78 = vshrl.u32 %v77, 23
    %v79 = vsub.s32 %v78, 127
    %v80 = vand.u32 2147483647, %v72
    %v81 = vand.u32 %v80, 8388607
    %v82 = vor.u32 %v81, 8388608
    %v83 = vsub.s32 0, %v82
    %v84 = vadd.s32 %v79, 1
    %vm85 = vcmp.gt.s32.totalorder %v84, 0
    %v86 = vsel %vm85, %v84, 0
    %v87 = vshrl.u32 %v86, 5
    %v88 = vand.u32 %v86, 31
    %v89 = vsub.s32 32, %v88
    %v90 = vshrl.u32 683565275, %v89
    %v91 = vshll.u32 683565275, %v88
    %v92 = vshrl.u32 2475754826, %v89
    %v93 = vor.u32 %v91, %v92
    %v94 = vshll.u32 2475754826, %v88
    %v95 = vshrl.u32 2131351028, %v89
    %v96 = vor.u32 %v94, %v95
    %v97 = vshll.u32 2131351028, %v88
    %v98 = vshrl.u32 2102212464, %v89
    %v99 = vor.u32 %v97, %v98
    %v100 = vshll.u32 2102212464, %v88
    %v101 = vshrl.u32 920167782, %v89
    %v102 = vor.u32 %v100, %v101
    %v103 = vshll.u32 920167782, %v88
    %v104 = vshrl.u32 1326507024, %v89
    %v105 = vor.u32 %v103, %v104
    %vm106 = vcmp.lt.s32.totalorder %v87, 1
    %vm107 = vcmp.lt.s32.totalorder %v87, 2
    %vm108 = vcmp.lt.s32.totalorder %v87, 3
    %vm109 = vcmp.lt.s32.totalorder %v87, 4
    %v110 = vsel %vm106, %v90, %v93
    %v111 = vsel %vm109, %v99, 2102212464
    %v112 = vsel %vm108, %v96, %v111
    %v113 = vsel %vm107, %v110, %v112
    %v114 = vsel %vm106, %v93, %v96
    %v115 = vsel %vm109, %v102, 920167782
    %v116 = vsel %vm108, %v99, %v115
    %v117 = vsel %vm107, %v114, %v116
    %v118 = vsel %vm106, %v96, %v99
    %v119 = vsel %vm109, %v105, 1326507024
    %v120 = vsel %vm108, %v102, %v119
    %v121 = vsel %vm107, %v118, %v120
    %v122 = vshll.u32 %v82, 8
    %v123 = vand.u32 %v122, 65535
    %v124 = vshrl.u32 %v122, 16
    %v125 = vand.u32 %v121, 65535
    %v126 = vshrl.u32 %v121, 16
    %v127 = vmul.u32 %v123, %v125
    %v128 = vmul.u32 %v123, %v126
    %v129 = vmul.u32 %v124, %v125
    %v130 = vmul.u32 %v124, %v126
    %v131 = vshll.u32 %v128, 16
    %v132 = vshrl.u32 %v128, 16
    %v133 = vshll.u32 %v129, 16
    %v134 = vshrl.u32 %v129, 16
    %vm135 = vc.u32 %v127, %v131
    %v136 = vsel %vm135, 1, 0
    %v137 = vadd.s32 %v127, %v131
    %v138 = vadd.s32 %v130, %v136
    %vm139 = vc.u32 %v137, %v133
    %v140 = vsel %vm139, 1, 0
    %v141 = vadd.s32 %v137, %v133
    %v142 = vadd.s32 %v138, %v140
    %v143 = vadd.s32 %v142, %v132
    %v144 = vadd.s32 %v143, %v134
    %v145 = vand.u32 %v122, 65535
    %v146 = vshrl.u32 %v122, 16
    %v147 = vand.u32 %v117, 65535
    %v148 = vshrl.u32 %v117, 16
    %v149 = vmul.u32 %v145, %v147
    %v150 = vmul.u32 %v145, %v148
    %v151 = vmul.u32 %v146, %v147
    %v152 = vmul.u32 %v146, %v148
    %v153 = vshll.u32 %v150, 16
    %v154 = vshrl.u32 %v150, 16
    %v155 = vshll.u32 %v151, 16
    %v156 = vshrl.u32 %v151, 16
    %vm157 = vc.u32 %v149, %v153
    %v158 = vsel %vm157, 1, 0
    %v159 = vadd.s32 %v149, %v153
    %v160 = vadd.s32 %v152, %v158
    %vm161 = vc.u32 %v159, %v155
    %v162 = vsel %vm161, 1, 0
    %v163 = vadd.s32 %v159, %v155
    %v164 = vadd.s32 %v160, %v162
    %v165 = vadd.s32 %v164, %v154
    %v166 = vadd.s32 %v165, %v156
    %v167 = vmul.u32 %v122, %v113
    %v168 = vadd.s32 %v144, %v163
    %vm169 = vc.u32 %v144, %v163
    %v170 = vadd.s32 %v166, 1
    %v171 = vsel %vm169, %v170, %v166
    %v172 = vadd.s32 %v167, %v171
    %v173 = vadd.s32 %v172, 536870912
    %v174 = vshrl.u32 %v173, 30
    %v175 = vshll.u32 %v174, 30
    %v176 = vsub.s32 %v172, %v175
    %vm177 = vcmp.lt.s32.totalorder %v176, 0
    %v178 = vsub.s32 0, %v176
    %v179 = vsel %vm177, %v178, %v176
    %v180 = vclz %v179
    %v181 = vsub.s32 %v180, 2
    %vm182 = vcmp.gt.s32.totalorder 0, %v181
    %v183 = vsel %vm182, 0, %v181
    %v184 = vsub.s32 32, %v183
    %v185 = vshll.u32 %v176, %v183
    %v186 = vshrl.u32 %v168, %v184
    %v187 = vor.u32 %v185, %v186
    %v188 = vsub.s32 4294967266, %v183
    %v189 = vadd.s32 %v188, 127
    %v190 = vshll.u32 %v189, 23
    %v191 = vor.u32 4788187, %v190
    %v192 = vand.u32 2147483647, %v191
    %v194 = vcvt.s32.f32 %v187
    %v195 = vmul.f32 %v194, %v192
    %v196 = vxor.u32 %v195, 2147483648
    %v197 = vsel %vm76, %v196, %v195
    %v198 = vsub.s32 4, %v174
    %v199 = vsel %vm76, %v198, %v174
    %v200 = vsel %vm75, %v72, %v197
    %v201 = vsel %vm75, 0, %v199
    %v202 = vmul.f32 %v200, %v200
    %v203 = vmul.f32 %v202, -0.001358992
    %v204 = vadd.f32 %v203, 0.041655596
    %v205 = vmul.f32 %v202, %v204
    %v206 = vadd.f32 %v205, -0.4999988
    %v207 = vmul.f32 %v202, %v206
    %v208 = vadd.f32 1.0, %v207
    %v209 = vmul.f32 %v200, %v200
    %v210 = vmul.f32 %v209, -0.00019511016
    %v211 = vadd.f32 %v210, 0.008332121
    %v212 = vmul.f32 %v209, %v211
    %v213 = vadd.f32 %v212, -0.16666654
    %v214 = vmul.f32 %v209, %v213
    %v215 = vadd.f32 %v214, 1.0
    %v216 = vmul.f32 %v215, %v200
    %vm217 = vweird.f32 %v72
    %v218 = vand.u32 %v201, 3
    %vm219 = vcmp.lt.s32.totalorder %v218, 2
    %vm220 = vcmp.eq.s32.totalorder %v218, 0
    %v221 = vxor.u32 %v216, 2147483648
    %v222 = vsel %vm220, %v208, %v221
    %vm223 = vcmp.eq.s32.totalorder %v218, 2
    %v224 = vxor.u32 %v208, 2147483648
    %v225 = vsel %vm223, %v224, %v216
    %v226 = vsel %vm219, %v222, %v225
    %v227 = vsel %vm217, nan, %v226
    %v228 = vand.u32 2147483647, %v73
    %vm229 = vcmp.le.f32.partialorder %v228, 0.7853982
    %vm230 = vcmp.lt.s32.totalorder %v73, 0
    %v231 = vand.u32 %v73, 2139095040
    %v232 = vshrl.u32 %v231, 23
    %v233 = vsub.s32 %v232, 127
    %v234 = vand.u32 2147483647, %v73
    %v235 = vand.u32 %v234, 8388607
    %v236 = vor.u32 %v235, 8388608
    %v237 = vsub.s32 0, %v236
    %v238 = vadd.s32 %v233, 1
    %vm239 = vcmp.gt.s32.totalorder %v238, 0
    %v240 = vsel %vm239, %v238, 0
    %v241 = vshrl.u32 %v240, 5
    %v242 = vand.u32 %v240, 31
    %v243 = vsub.s32 32, %v242
    %v244 = vshrl.u32 683565275, %v243
    %v245 = vshll.u32 683565275, %v242
    %v246 = vshrl.u32 2475754826, %v243
    %v247 = vor.u32 %v245, %v246
    %v248 = vshll.u32 2475754826, %v242
    %v249 = vshrl.u32 2131351028, %v243
    %v250 = vor.u32 %v248, %v249
    %v251 = vshll.u32 2131351028, %v242
    %v252 = vshrl.u32 2102212464, %v243
    %v253 = vor.u32 %v251, %v252
    %v254 = vshll.u32 2102212464, %v242
    %v255 = vshrl.u32 920167782, %v243
    %v256 = vor.u32 %v254, %v255
    %v257 = vshll.u32 920167782, %v242
    %v258 = vshrl.u32 1326507024, %v243
    %v259 = vor.u32 %v257, %v258
    %vm260 = vcmp.lt.s32.totalorder %v241, 1
    %vm261 = vcmp.lt.s32.totalorder %v241, 2
    %vm262 = vcmp.lt.s32.totalorder %v241, 3
    %vm263 = vcmp.lt.s32.totalorder %v241, 4
    %v264 = vsel %vm260, %v244, %v247
    %v265 = vsel %vm263, %v253, 2102212464
    %v266 = vsel %vm262, %v250, %v265
    %v267 = vsel %vm261, %v264, %v266
    %v268 = vsel %vm260, %v247, %v250
    %v269 = vsel %vm263, %v256, 920167782
    %v270 = vsel %vm262, %v253, %v269
    %v271 = vsel %vm261, %v268, %v270
    %v272 = vsel %vm260, %v250, %v253
    %v273 = vsel %vm263, %v259, 1326507024
    %v274 = vsel %vm262, %v256, %v273
    %v275 = vsel %vm261, %v272, %v274
    %v276 = vshll.u32 %v236, 8
    %v277 = vand.u32 %v276, 65535
    %v278 = vshrl.u32 %v276, 16
    %v279 = vand.u32 %v275, 65535
    %v280 = vshrl.u32 %v275, 16
    %v281 = vmul.u32 %v277, %v279
    %v282 = vmul.u32 %v277, %v280
    %v283 = vmul.u32 %v278, %v279
    %v284 = vmul.u32 %v278, %v280
    %v285 = vshll.u32 %v282, 16
    %v286 = vshrl.u32 %v282, 16
    %v287 = vshll.u32 %v283, 16
    %v288 = vshrl.u32 %v283, 16
    %vm289 = vc.u32 %v281, %v285
    %v290 = vsel %vm289, 1, 0
    %v291 = vadd.s32 %v281, %v285
    %v292 = vadd.s32 %v284, %v290
    %vm293 = vc.u32 %v291, %v287
    %v294 = vsel %vm293, 1, 0
    %v295 = vadd.s32 %v291, %v287
    %v296 = vadd.s32 %v292, %v294
    %v297 = vadd.s32 %v296, %v286
    %v298 = vadd.s32 %v297, %v288
    %v299 = vand.u32 %v276, 65535
    %v300 = vshrl.u32 %v276, 16
    %v301 = vand.u32 %v271, 65535
    %v302 = vshrl.u32 %v271, 16
    %v303 = vmul.u32 %v299, %v301
    %v304 = vmul.u32 %v299, %v302
    %v305 = vmul.u32 %v300, %v301
    %v306 = vmul.u32 %v300, %v302
    %v307 = vshll.u32 %v304, 16
    %v308 = vshrl.u32 %v304, 16
    %v309 = vshll.u32 %v305, 16
    %v310 = vshrl.u32 %v305, 16
    %vm311 = vc.u32 %v303, %v307
    %v312 = vsel %vm311, 1, 0
    %v313 = vadd.s32 %v303, %v307
    %v314 = vadd.s32 %v306, %v312
    %vm315 = vc.u32 %v313, %v309
    %v316 = vsel %vm315, 1, 0
    %v317 = vadd.s32 %v313, %v309
    %v318 = vadd.s32 %v314, %v316
    %v319 = vadd.s32 %v318, %v308
    %v320 = vadd.s32 %v319, %v310
    %v321 = vmul.u32 %v276, %v267
    %v322 = vadd.s32 %v298, %v317
    %vm323 = vc.u32 %v298, %v317
    %v324 = vadd.s32 %v320, 1
    %v325 = vsel %vm323, %v324, %v320
    %v326 = vadd.s32 %v321, %v325
    %v327 = vadd.s32 %v326, 536870912
    %v328 = vshrl.u32 %v327, 30
    %v329 = vshll.u32 %v328, 30
    %v330 = vsub.s32 %v326, %v329
    %vm331 = vcmp.lt.s32.totalorder %v330, 0
    %v332 = vsub.s32 0, %v330
    %v333 = vsel %vm331, %v332, %v330
    %v334 = vclz %v333
    %v335 = vsub.s32 %v334, 2
    %vm336 = vcmp.gt.s32.totalorder 0, %v335
    %v337 = vsel %vm336, 0, %v335
    %v338 = vsub.s32 32, %v337
    %v339 = vshll.u32 %v330, %v337
    %v340 = vshrl.u32 %v322, %v338
    %v341 = vor.u32 %v339, %v340
    %v342 = vsub.s32 4294967266, %v337
    %v343 = vadd.s32 %v342, 127
    %v344 = vshll.u32 %v343, 23
    %v345 = vor.u32 4788187, %v344
    %v346 = vand.u32 2147483647, %v345
    %v348 = vcvt.s32.f32 %v341
    %v349 = vmul.f32 %v348, %v346
    %v350 = vxor.u32 %v349, 2147483648
    %v351 = vsel %vm230, %v350, %v349
    %v352 = vsub.s32 4, %v328
    %v353 = vsel %vm230, %v352, %v328
    %v354 = vsel %vm229, %v73, %v351
    %v355 = vsel %vm229, 0, %v353
    %v356 = vmul.f32 %v354, %v354
    %v357 = vmul.f32 %v356, -0.001358992
    %v358 = vadd.f32 %v357, 0.041655596
    %v359 = vmul.f32 %v356, %v358
    %v360 = vadd.f32 %v359, -0.4999988
    %v361 = vmul.f32 %v356, %v360
    %v362 = vadd.f32 1.0, %v361
    %v363 = vmul.f32 %v354, %v354
    %v364 = vmul.f32 %v363, -0.00019511016
    %v365 = vadd.f32 %v364, 0.008332121
    %v366 = vmul.f32 %v363, %v365
    %v367 = vadd.f32 %v366, -0.16666654
    %v368 = vmul.f32 %v363, %v367
    %v369 = vadd.f32 %v368, 1.0
    %v370 = vmul.f32 %v369, %v354
    %vm371 = vweird.f32 %v73
    %v372 = vand.u32 %v355, 3
    %vm373 = vcmp.lt.s32.totalorder %v372, 2
    %vm374 = vcmp.eq.s32.totalorder %v372, 0
    %v375 = vxor.u32 %v370, 2147483648
    %v376 = vsel %vm374, %v362, %v375
    %vm377 = vcmp.eq.s32.totalorder %v372, 2
    %v378 = vxor.u32 %v362, 2147483648
    %v379 = vsel %vm377, %v378, %v370
    %v380 = vsel %vm373, %v376, %v379
    %v381 = vsel %vm371, nan, %v380
    %v382 = vand.u32 2147483647, %v72
    %vm383 = vcmp.le.f32.partialorder %v382, 0.7853982
    %vm384 = vcmp.lt.s32.totalorder %v72, 0
    %v385 = vand.u32 %v72, 2139095040
    %v386 = vshrl.u32 %v385, 23
    %v387 = vsub.s32 %v386, 127
    %v388 = vand.u32 2147483647, %v72
    %v389 = vand.u32 %v388, 8388607
    %v390 = vor.u32 %v389, 8388608
    %v391 = vsub.s32 0, %v390
    %v392 = vadd.s32 %v387, 1
    %vm393 = vcmp.gt.s32.totalorder %v392, 0
    %v394 = vsel %vm393, %v392, 0
    %v395 = vshrl.u32 %v394, 5
    %v396 = vand.u32 %v394, 31
    %v397 = vsub.s32 32, %v396
    %v398 = vshrl.u32 683565275, %v397
    %v399 = vshll.u32 683565275, %v396
    %v400 = vshrl.u32 2475754826, %v397
    %v401 = vor.u32 %v399, %v400
    %v402 = vshll.u32 2475754826, %v396
    %v403 = vshrl.u32 2131351028, %v397
    %v404 = vor.u32 %v402, %v403
    %v405 = vshll.u32 2131351028, %v396
    %v406 = vshrl.u32 2102212464, %v397
    %v407 = vor.u32 %v405, %v406
    %v408 = vshll.u32 2102212464, %v396
    %v409 = vshrl.u32 920167782, %v397
    %v410 = vor.u32 %v408, %v409
    %v411 = vshll.u32 920167782, %v396
    %v412 = vshrl.u32 1326507024, %v397
    %v413 = vor.u32 %v411, %v412
    %vm414 = vcmp.lt.s32.totalorder %v395, 1
    %vm415 = vcmp.lt.s32.totalorder %v395, 2
    %vm416 = vcmp.lt.s32.totalorder %v395, 3
    %vm417 = vcmp.lt.s32.totalorder %v395, 4
    %v418 = vsel %vm414, %v398, %v401
    %v419 = vsel %vm417, %v407, 2102212464
    %v420 = vsel %vm416, %v404, %v419
    %v421 = vsel %vm415, %v418, %v420
    %v422 = vsel %vm414, %v401, %v404
    %v423 = vsel %vm417, %v410, 920167782
    %v424 = vsel %vm416, %v407, %v423
    %v425 = vsel %vm415, %v422, %v424
    %v426 = vsel %vm414, %v404, %v407
    %v427 = vsel %vm417, %v413, 1326507024
    %v428 = vsel %vm416, %v410, %v427
    %v429 = vsel %vm415, %v426, %v428
    %v430 = vshll.u32 %v390, 8
    %v431 = vand.u32 %v430, 65535
    %v432 = vshrl.u32 %v430, 16
    %v433 = vand.u32 %v429, 65535
    %v434 = vshrl.u32 %v429, 16
    %v435 = vmul.u32 %v431, %v433
    %v436 = vmul.u32 %v431, %v434
    %v437 = vmul.u32 %v432, %v433
    %v438 = vmul.u32 %v432, %v434
    %v439 = vshll.u32 %v436, 16
    %v440 = vshrl.u32 %v436, 16
    %v441 = vshll.u32 %v437, 16
    %v442 = vshrl.u32 %v437, 16
    %vm443 = vc.u32 %v435, %v439
    %v444 = vsel %vm443, 1, 0
    %v445 = vadd.s32 %v435, %v439
    %v446 = vadd.s32 %v438, %v444
    %vm447 = vc.u32 %v445, %v441
    %v448 = vsel %vm447, 1, 0
    %v449 = vadd.s32 %v445, %v441
    %v450 = vadd.s32 %v446, %v448
    %v451 = vadd.s32 %v450, %v440
    %v452 = vadd.s32 %v451, %v442
    %v453 = vand.u32 %v430, 65535
    %v454 = vshrl.u32 %v430, 16
    %v455 = vand.u32 %v425, 65535
    %v456 = vshrl.u32 %v425, 16
    %v457 = vmul.u32 %v453, %v455
    %v458 = vmul.u32 %v453, %v456
    %v459 = vmul.u32 %v454, %v455
    %v460 = vmul.u32 %v454, %v456
    %v461 = vshll.u32 %v458, 16
    %v462 = vshrl.u32 %v458, 16
    %v463 = vshll.u32 %v459, 16
    %v464 = vshrl.u32 %v459, 16
    %vm465 = vc.u32 %v457, %v461
    %v466 = vsel %vm465, 1, 0
    %v467 = vadd.s32 %v457, %v461
    %v468 = vadd.s32 %v460, %v466
    %vm469 = vc.u32 %v467, %v463
    %v470 = vsel %vm469, 1, 0
    %v471 = vadd.s32 %v467, %v463
    %v472 = vadd.s32 %v468, %v470
    %v473 = vadd.s32 %v472, %v462
    %v474 = vadd.s32 %v473, %v464
    %v475 = vmul.u32 %v430, %v421
    %v476 = vadd.s32 %v452, %v471
    %vm477 = vc.u32 %v452, %v471
    %v478 = vadd.s32 %v474, 1
    %v479 = vsel %vm477, %v478, %v474
    %v480 = vadd.s32 %v475, %v479
    %v481 = vadd.s32 %v480, 536870912
    %v482 = vshrl.u32 %v481, 30
    %v483 = vshll.u32 %v482, 30
    %v484 = vsub.s32 %v480, %v483
    %vm485 = vcmp.lt.s32.totalorder %v484, 0
    %v486 = vsub.s32 0, %v484
    %v487 = vsel %vm485, %v486, %v484
    %v488 = vclz %v487
    %v489 = vsub.s32 %v488, 2
    %vm490 = vcmp.gt.s32.totalorder 0, %v489
    %v491 = vsel %vm490, 0, %v489
    %v492 = vsub.s32 32, %v491
    %v493 = vshll.u32 %v484, %v491
    %v494 = vshrl.u32 %v476, %v492
    %v495 = vor.u32 %v493, %v494
    %v496 = vsub.s32 4294967266, %v491
    %v497 = vadd.s32 %v496, 127
    %v498 = vshll.u32 %v497, 23
    %v499 = vor.u32 4788187, %v498
    %v500 = vand.u32 2147483647, %v499
    %v502 = vcvt.s32.f32 %v495
    %v503 = vmul.f32 %v502, %v500
    %v504 = vxor.u32 %v503, 2147483648
    %v505 = vsel %vm384, %v504, %v503
    %v506 = vsub.s32 4, %v482
    %v507 = vsel %vm384, %v506, %v482
    %v508 = vsel %vm383, %v72, %v505
    %v509 = vsel %vm383, 0, %v507
    %v510 = vmul.f32 %v508, %v508
    %v511 = vmul.f32 %v510, -0.001358992
    %v512 = vadd.f32 %v511, 0.041655596
    %v513 = vmul.f32 %v510, %v512
    %v514 = vadd.f32 %v513, -0.4999988
    %v515 = vmul.f32 %v510, %v514
    %v516 = vadd.f32 1.0, %v515
    %v517 = vmul.f32 %v508, %v508
    %v518 = vmul.f32 %v517, -0.00019511016
    %v519 = vadd.f32 %v518, 0.008332121
    %v520 = vmul.f32 %v517, %v519
    %v521 = vadd.f32 %v520, -0.16666654
    %v522 = vmul.f32 %v517, %v521
    %v523 = vadd.f32 %v522, 1.0
    %v524 = vmul.f32 %v523, %v508
    %vm525 = vweird.f32 %v72
    %v526 = vadd.s32 %v509, 3
    %v527 = vand.u32 %v526, 3
    %vm528 = vcmp.lt.s32.totalorder %v527, 2
    %vm529 = vcmp.eq.s32.totalorder %v527, 0
    %v530 = vxor.u32 %v524, 2147483648
    %v531 = vsel %vm529, %v516, %v530
    %vm532 = vcmp.eq.s32.totalorder %v527, 2
    %v533 = vxor.u32 %v516, 2147483648
    %v534 = vsel %vm532, %v533, %v524
    %v535 = vsel %vm528, %v531, %v534
    %v536 = vsel %vm525, nan, %v535
    %v537 = vand.u32 2147483647, %v73
    %vm538 = vcmp.le.f32.partialorder %v537, 0.7853982
    %vm539 = vcmp.lt.s32.totalorder %v73, 0
    %v540 = vand.u32 %v73, 2139095040
    %v541 = vshrl.u32 %v540, 23
    %v542 = vsub.s32 %v541, 127
    %v543 = vand.u32 2147483647, %v73
    %v544 = vand.u32 %v543, 8388607
    %v545 = vor.u32 %v544, 8388608
    %v546 = vsub.s32 0, %v545
    %v547 = vadd.s32 %v542, 1
    %vm548 = vcmp.gt.s32.totalorder %v547, 0
    %v549 = vsel %vm548, %v547, 0
    %v550 = vshrl.u32 %v549, 5
    %v551 = vand.u32 %v549, 31
    %v552 = vsub.s32 32, %v551
    %v553 = vshrl.u32 683565275, %v552
    %v554 = vshll.u32 683565275, %v551
    %v555 = vshrl.u32 2475754826, %v552
    %v556 = vor.u32 %v554, %v555
    %v557 = vshll.u32 2475754826, %v551
    %v558 = vshrl.u32 2131351028, %v552
    %v559 = vor.u32 %v557, %v558
    %v560 = vshll.u32 2131351028, %v551
    %v561 = vshrl.u32 2102212464, %v552
    %v562 = vor.u32 %v560, %v561
    %v563 = vshll.u32 2102212464, %v551
    %v564 = vshrl.u32 920167782, %v552
    %v565 = vor.u32 %v563, %v564
    %v566 = vshll.u32 920167782, %v551
    %v567 = vshrl.u32 1326507024, %v552
    %v568 = vor.u32 %v566, %v567
    %vm569 = vcmp.lt.s32.totalorder %v550, 1
    %vm570 = vcmp.lt.s32.totalorder %v550, 2
    %vm571 = vcmp.lt.s32.totalorder %v550, 3
    %vm572 = vcmp.lt.s32.totalorder %v550, 4
    %v573 = vsel %vm569, %v553, %v556
    %v574 = vsel %vm572, %v562, 2102212464
    %v575 = vsel %vm571, %v559, %v574
    %v576 = vsel %vm570, %v573, %v575
    %v577 = vsel %vm569, %v556, %v559
    %v578 = vsel %vm572, %v565, 920167782
    %v579 = vsel %vm571, %v562, %v578
    %v580 = vsel %vm570, %v577, %v579
    %v581 = vsel %vm569, %v559, %v562
    %v582 = vsel %vm572, %v568, 1326507024
    %v583 = vsel %vm571, %v565, %v582
    %v584 = vsel %vm570, %v581, %v583
    %v585 = vshll.u32 %v545, 8
    %v586 = vand.u32 %v585, 65535
    %v587 = vshrl.u32 %v585, 16
    %v588 = vand.u32 %v584, 65535
    %v589 = vshrl.u32 %v584, 16
    %v590 = vmul.u32 %v586, %v588
    %v591 = vmul.u32 %v586, %v589
    %v592 = vmul.u32 %v587, %v588
    %v593 = vmul.u32 %v587, %v589
    %v594 = vshll.u32 %v591, 16
    %v595 = vshrl.u32 %v591, 16
    %v596 = vshll.u32 %v592, 16
    %v597 = vshrl.u32 %v592, 16
    %vm598 = vc.u32 %v590, %v594
    %v599 = vsel %vm598, 1, 0
    %v600 = vadd.s32 %v590, %v594
    %v601 = vadd.s32 %v593, %v599
    %vm602 = vc.u32 %v600, %v596
    %v603 = vsel %vm602, 1, 0
    %v604 = vadd.s32 %v600, %v596
    %v605 = vadd.s32 %v601, %v603
    %v606 = vadd.s32 %v605, %v595
    %v607 = vadd.s32 %v606, %v597
    %v608 = vand.u32 %v585, 65535
    %v609 = vshrl.u32 %v585, 16
    %v610 = vand.u32 %v580, 65535
    %v611 = vshrl.u32 %v580, 16
    %v612 = vmul.u32 %v608, %v610
    %v613 = vmul.u32 %v608, %v611
    %v614 = vmul.u32 %v609, %v610
    %v615 = vmul.u32 %v609, %v611
    %v616 = vshll.u32 %v613, 16
    %v617 = vshrl.u32 %v613, 16
    %v618 = vshll.u32 %v614, 16
    %v619 = vshrl.u32 %v614, 16
    %vm620 = vc.u32 %v612, %v616
    %v621 = vsel %vm620, 1, 0
    %v622 = vadd.s32 %v612, %v616
    %v623 = vadd.s32 %v615, %v621
    %vm624 = vc.u32 %v622, %v618
    %v625 = vsel %vm624, 1, 0
    %v626 = vadd.s32 %v622, %v618
    %v627 = vadd.s32 %v623, %v625
    %v628 = vadd.s32 %v627, %v617
    %v629 = vadd.s32 %v628, %v619
    %v630 = vmul.u32 %v585, %v576
    %v631 = vadd.s32 %v607, %v626
    %vm632 = vc.u32 %v607, %v626
    %v633 = vadd.s32 %v629, 1
    %v634 = vsel %vm632, %v633, %v629
    %v635 = vadd.s32 %v630, %v634
    %v636 = vadd.s32 %v635, 536870912
    %v637 = vshrl.u32 %v636, 30
    %v638 = vshll.u32 %v637, 30
    %v639 = vsub.s32 %v635, %v638
    %vm640 = vcmp.lt.s32.totalorder %v639, 0
    %v641 = vsub.s32 0, %v639
    %v642 = vsel %vm640, %v641, %v639
    %v643 = vclz %v642
    %v644 = vsub.s32 %v643, 2
    %vm645 = vcmp.gt.s32.totalorder 0, %v644
    %v646 = vsel %vm645, 0, %v644
    %v647 = vsub.s32 32, %v646
    %v648 = vshll.u32 %v639, %v646
    %v649 = vshrl.u32 %v631, %v647
    %v650 = vor.u32 %v648, %v649
    %v651 = vsub.s32 4294967266, %v646
    %v652 = vadd.s32 %v651, 127
    %v653 = vshll.u32 %v652, 23
    %v654 = vor.u32 4788187, %v653
    %v655 = vand.u32 2147483647, %v654
    %v657 = vcvt.s32.f32 %v650
    %v658 = vmul.f32 %v657, %v655
    %v659 = vxor.u32 %v658, 2147483648
    %v660 = vsel %vm539, %v659, %v658
    %v661 = vsub.s32 4, %v637
    %v662 = vsel %vm539, %v661, %v637
    %v663 = vsel %vm538, %v73, %v660
    %v664 = vsel %vm538, 0, %v662
    %v665 = vmul.f32 %v663, %v663
    %v666 = vmul.f32 %v665, -0.001358992
    %v667 = vadd.f32 %v666, 0.041655596
    %v668 = vmul.f32 %v665, %v667
    %v669 = vadd.f32 %v668, -0.4999988
    %v670 = vmul.f32 %v665, %v669
    %v671 = vadd.f32 1.0, %v670
    %v672 = vmul.f32 %v663, %v663
    %v673 = vmul.f32 %v672, -0.00019511016
    %v674 = vadd.f32 %v673, 0.008332121
    %v675 = vmul.f32 %v672, %v674
    %v676 = vadd.f32 %v675, -0.16666654
    %v677 = vmul.f32 %v672, %v676
    %v678 = vadd.f32 %v677, 1.0
    %v679 = vmul.f32 %v678, %v663
    %vm680 = vweird.f32 %v73
    %v681 = vadd.s32 %v664, 3
    %v682 = vand.u32 %v681, 3
    %vm683 = vcmp.lt.s32.totalorder %v682, 2
    %vm684 = vcmp.eq.s32.totalorder %v682, 0
    %v685 = vxor.u32 %v679, 2147483648
    %v686 = vsel %vm684, %v671, %v685
    %vm687 = vcmp.eq.s32.totalorder %v682, 2
    %v688 = vxor.u32 %v671, 2147483648
    %v689 = vsel %vm687, %v688, %v679
    %v690 = vsel %vm683, %v686, %v689
    %v691 = vsel %vm680, nan, %v690
    %v692 = vpack.c.bf16 %v381, %v227
    %v693 = vpack.c.bf16 %v691, %v536
    %v694 = vld [vmem:[#allocation2] sm:$0xff]
    %v695 = vld [vmem:[#allocation2 + $0x8] sm:$0xff]
    %v696 = vld [vmem:[#allocation2 + $0x10] sm:$0xff]
    %v697 = vld [vmem:[#allocation2 + $0x18] sm:$0xff]
    %v698 = vld [vmem:[#allocation2 + $0x20] sm:$0xff]
    %v699 = vld [vmem:[#allocation2 + $0x28] sm:$0xff]
    %v700 = vld [vmem:[#allocation2 + $0x30] sm:$0xff]
    %v701 = vld [vmem:[#allocation2 + $0x38] sm:$0xff]
    %v702 = vld [vmem:[#allocation2 + $0x40] sm:$0xff]
    %v703 = vld [vmem:[#allocation2 + $0x48] sm:$0xff]
    %v704 = vld [vmem:[#allocation2 + $0x50] sm:$0xff]
    %v705 = vld [vmem:[#allocation2 + $0x58] sm:$0xff]
    %v706 = vld [vmem:[#allocation2 + $0x60] sm:$0xff]
    %v707 = vld [vmem:[#allocation2 + $0x68] sm:$0xff]
    %v708 = vld [vmem:[#allocation2 + $0x70] sm:$0xff]
    %v709 = vld [vmem:[#allocation2 + $0x78] sm:$0xff]
    %v710 = vld [vmem:[#allocation2 + $0x80] sm:$0xff]
    %v711 = vld [vmem:[#allocation2 + $0x88] sm:$0xff]
    %v712 = vld [vmem:[#allocation2 + $0x90] sm:$0xff]
    %v713 = vld [vmem:[#allocation2 + $0x98] sm:$0xff]
    %v714 = vld [vmem:[#allocation2 + $0xa0] sm:$0xff]
    %v715 = vld [vmem:[#allocation2 + $0xa8] sm:$0xff]
    %v716 = vld [vmem:[#allocation2 + $0xb0] sm:$0xff]
    %v717 = vld [vmem:[#allocation2 + $0xb8] sm:$0xff]
    %v718 = vld [vmem:[#allocation2 + $0xc0] sm:$0xff]
    %v719 = vld [vmem:[#allocation2 + $0xc8] sm:$0xff]
    %v720 = vld [vmem:[#allocation2 + $0xd0] sm:$0xff]
    %v721 = vld [vmem:[#allocation2 + $0xd8] sm:$0xff]
    %v722 = vld [vmem:[#allocation2 + $0xe0] sm:$0xff]
    %v723 = vld [vmem:[#allocation2 + $0xe8] sm:$0xff]
    %v724 = vld [vmem:[#allocation2 + $0xf0] sm:$0xff]
    %v725 = vld [vmem:[#allocation2 + $0xf8] sm:$0xff]
    %v726 = vld [vmem:[%s3] sm:$0x3]
    %v728 = vperm.slane %v726, 0
    %v729 = vperm.slane %v726, 1
    %v764 = vunpack.c.l.b16 %v694
    %v765 = vunpack.c.h.b16 %v694
    %v766 = vunpack.c.l.b16 %v695
    %v767 = vunpack.c.h.b16 %v695
    %v768 = vunpack.c.l.b16 %v696
    %v769 = vunpack.c.h.b16 %v696
    %v770 = vunpack.c.l.b16 %v697
    %v771 = vunpack.c.h.b16 %v697
    %v772 = vunpack.c.l.b16 %v698
    %v773 = vunpack.c.h.b16 %v698
    %v774 = vunpack.c.l.b16 %v699
    %v775 = vunpack.c.h.b16 %v699
    %v776 = vunpack.c.l.b16 %v700
    %v777 = vunpack.c.h.b16 %v700
    %v778 = vunpack.c.l.b16 %v701
    %v779 = vunpack.c.h.b16 %v701
    %v780 = vunpack.c.l.b16 %v702
    %v781 = vunpack.c.h.b16 %v702
    %v782 = vunpack.c.l.b16 %v703
    %v783 = vunpack.c.h.b16 %v703
    %v784 = vunpack.c.l.b16 %v704
    %v785 = vunpack.c.h.b16 %v704
    %v786 = vunpack.c.l.b16 %v705
    %v787 = vunpack.c.h.b16 %v705
    %v788 = vunpack.c.l.b16 %v706
    %v789 = vunpack.c.h.b16 %v706
    %v790 = vunpack.c.l.b16 %v707
    %v791 = vunpack.c.h.b16 %v707
    %v792 = vunpack.c.l.b16 %v708
    %v793 = vunpack.c.h.b16 %v708
    %v794 = vunpack.c.l.b16 %v709
    %v795 = vunpack.c.h.b16 %v709
    %v796 = vunpack.c.l.b16 %v710
    %v797 = vunpack.c.h.b16 %v710
    %v798 = vunpack.c.l.b16 %v711
    %v799 = vunpack.c.h.b16 %v711
    %v800 = vunpack.c.l.b16 %v712
    %v801 = vunpack.c.h.b16 %v712
    %v802 = vunpack.c.l.b16 %v713
    %v803 = vunpack.c.h.b16 %v713
    %v804 = vunpack.c.l.b16 %v714
    %v805 = vunpack.c.h.b16 %v714
    %v806 = vunpack.c.l.b16 %v715
    %v807 = vunpack.c.h.b16 %v715
    %v808 = vunpack.c.l.b16 %v716
    %v809 = vunpack.c.h.b16 %v716
    %v810 = vunpack.c.l.b16 %v717
    %v811 = vunpack.c.h.b16 %v717
    %v812 = vunpack.c.l.b16 %v718
    %v813 = vunpack.c.h.b16 %v718
    %v814 = vunpack.c.l.b16 %v719
    %v815 = vunpack.c.h.b16 %v719
    %v816 = vunpack.c.l.b16 %v720
    %v817 = vunpack.c.h.b16 %v720
    %v818 = vunpack.c.l.b16 %v721
    %v819 = vunpack.c.h.b16 %v721
    %v820 = vunpack.c.l.b16 %v722
    %v821 = vunpack.c.h.b16 %v722
    %v822 = vunpack.c.l.b16 %v723
    %v823 = vunpack.c.h.b16 %v723
    %v824 = vunpack.c.l.b16 %v724
    %v825 = vunpack.c.h.b16 %v724
    %v826 = vunpack.c.l.b16 %v725
    %v827 = vunpack.c.h.b16 %v725
    %v828 = vpack.c.b16 %v766, %v764
    %v829 = vpack.c.b16 %v767, %v765
    %v830 = vpack.c.b16 %v770, %v768
    %v831 = vpack.c.b16 %v771, %v769
    %v832 = vpack.c.b16 %v774, %v772
    %v833 = vpack.c.b16 %v775, %v773
    %v834 = vpack.c.b16 %v778, %v776
    %v835 = vpack.c.b16 %v779, %v777
    %v836 = vpack.c.b16 %v782, %v780
    %v837 = vpack.c.b16 %v783, %v781
    %v838 = vpack.c.b16 %v786, %v784
    %v839 = vpack.c.b16 %v787, %v785
    %v840 = vpack.c.b16 %v790, %v788
    %v841 = vpack.c.b16 %v791, %v789
    %v842 = vpack.c.b16 %v794, %v792
    %v843 = vpack.c.b16 %v795, %v793
    %v844 = vpack.c.b16 %v798, %v796
    %v845 = vpack.c.b16 %v799, %v797
    %v846 = vpack.c.b16 %v802, %v800
    %v847 = vpack.c.b16 %v803, %v801
    %v848 = vpack.c.b16 %v806, %v804
    %v849 = vpack.c.b16 %v807, %v805
    %v850 = vpack.c.b16 %v810, %v808
    %v851 = vpack.c.b16 %v811, %v809
    %v852 = vpack.c.b16 %v814, %v812
    %v853 = vpack.c.b16 %v815, %v813
    %v854 = vpack.c.b16 %v818, %v816
    %v855 = vpack.c.b16 %v819, %v817
    %v856 = vpack.c.b16 %v822, %v820
    %v857 = vpack.c.b16 %v823, %v821
    %v858 = vpack.c.b16 %v826, %v824
    %v859 = vpack.c.b16 %v827, %v825
    %892 = vmatpush.bf16.msra.mxu0 %v842
    %893 = vmatpush.bf16.msra.mxu0 %v840
    %894 = vmatpush.bf16.msra.mxu0 %v838
    %895 = vmatpush.bf16.msra.mxu0 %v836
    %896 = vmatpush.bf16.msra.mxu0 %v834
    %897 = vmatpush.bf16.msra.mxu0 %v832
    %898 = vmatpush.bf16.msra.mxu0 %v830
    %899 = vmatpush.bf16.msra.mxu0 %v828
    %900 = vmatmul.bf16.gmra.mxu0 %v692
    %v901 = vpop.f32.mrf.mxu0
    %v902 = vadd.f32 %v728, %v901
    %v903 = vpop.f32.mrf.mxu0
    %v904 = vadd.f32 %v728, %v903
    %905 = vdwg.mxu0
    %906 = vmatpush.bf16.msra.mxu0 %v858
    %907 = vmatpush.bf16.msra.mxu0 %v856
    %908 = vmatpush.bf16.msra.mxu0 %v854
    %909 = vmatpush.bf16.msra.mxu0 %v852
    %910 = vmatpush.bf16.msra.mxu0 %v850
    %911 = vmatpush.bf16.msra.mxu0 %v848
    %912 = vmatpush.bf16.msra.mxu0 %v846
    %913 = vmatpush.bf16.msra.mxu0 %v844
    %914 = vmatmul.bf16.gmra.mxu0 %v693
    %v915 = vpop.f32.mrf.mxu0
    %v916 = vadd.f32 %v902, %v915
    %v917 = vpop.f32.mrf.mxu0
    %v918 = vadd.f32 %v904, %v917
    %919 = vdwg.mxu0
    %920 = vmatpush.bf16.msra.mxu0 %v843
    %921 = vmatpush.bf16.msra.mxu0 %v841
    %922 = vmatpush.bf16.msra.mxu0 %v839
    %923 = vmatpush.bf16.msra.mxu0 %v837
    %924 = vmatpush.bf16.msra.mxu0 %v835
    %925 = vmatpush.bf16.msra.mxu0 %v833
    %926 = vmatpush.bf16.msra.mxu0 %v831
    %927 = vmatpush.bf16.msra.mxu0 %v829
    %928 = vmatmul.bf16.gmra.mxu0 %v692
    %v929 = vpop.f32.mrf.mxu0
    %v930 = vadd.f32 %v729, %v929
    %v931 = vpop.f32.mrf.mxu0
    %v932 = vadd.f32 %v729, %v931
    %933 = vdwg.mxu0
    %934 = vmatpush.bf16.msra.mxu0 %v859
    %935 = vmatpush.bf16.msra.mxu0 %v857
    %936 = vmatpush.bf16.msra.mxu0 %v855
    %937 = vmatpush.bf16.msra.mxu0 %v853
    %938 = vmatpush.bf16.msra.mxu0 %v851
    %939 = vmatpush.bf16.msra.mxu0 %v849
    %940 = vmatpush.bf16.msra.mxu0 %v847
    %941 = vmatpush.bf16.msra.mxu0 %v845
    %942 = vmatmul.bf16.gmra.mxu0 %v693
    %v943 = vpop.f32.mrf.mxu0
    %v944 = vadd.f32 %v930, %v943
    %v945 = vpop.f32.mrf.mxu0
    %v946 = vadd.f32 %v932, %v945
    %947 = vdwg.mxu0
    %v948 = vxor.u32 %v916, 2147483648
    %v949 = vxor.u32 %v944, 2147483648
    %v950 = vxor.u32 %v918, 2147483648
    %v951 = vxor.u32 %v946, 2147483648
    %v952 = vmul.f32 %v948, 1.442695
    %v953 = vpow.pop %v952
    %v954 = vmul.f32 %v949, 1.442695
    %v955 = vpow.pop %v954
    %v956 = vmul.f32 %v950, 1.442695
    %v957 = vpow.pop %v956
    %v958 = vmul.f32 %v951, 1.442695
    %v959 = vpow.pop %v958
    %v960 = vadd.f32 %v953, 1.0
    %v961 = vadd.f32 %v955, 1.0
    %v962 = vadd.f32 %v957, 1.0
    %v963 = vadd.f32 %v959, 1.0
    %v964 = vrcp.pop %v960
    %v965 = vmul.f32 %v960, %v964
    %v966 = vsub.f32 1.0, %v965
    %v967 = vmul.f32 %v964, %v966
    %v968 = vadd.f32 %v964, %v967
    %vm969 = vweird.f32 %v960
    %vm970 = vweird.f32 %v964
    %vm971 = vmor %vm969, %vm970
    %v972 = vsel %vm971, %v964, %v968
    %v973 = vand.u32 2147483647, %v960
    %vm974 = vcmp.eq.f32.partialorder %v973, 8.507059e+37
    %v975 = vand.u32 %v960, 2147483648
    %v976 = vor.u32 1.1754944e-38, %v975
    %v977 = vsel %vm974, %v976, %v972
    %v978 = vmul.f32 1.0, %v977
    %v979 = vrcp.pop %v961
    %v980 = vmul.f32 %v961, %v979
    %v981 = vsub.f32 1.0, %v980
    %v982 = vmul.f32 %v979, %v981
    %v983 = vadd.f32 %v979, %v982
    %vm984 = vweird.f32 %v961
    %vm985 = vweird.f32 %v979
    %vm986 = vmor %vm984, %vm985
    %v987 = vsel %vm986, %v979, %v983
    %v988 = vand.u32 2147483647, %v961
    %vm989 = vcmp.eq.f32.partialorder %v988, 8.507059e+37
    %v990 = vand.u32 %v961, 2147483648
    %v991 = vor.u32 1.1754944e-38, %v990
    %v992 = vsel %vm989, %v991, %v987
    %v993 = vmul.f32 1.0, %v992
    %v994 = vrcp.pop %v962
    %v995 = vmul.f32 %v962, %v994
    %v996 = vsub.f32 1.0, %v995
    %v997 = vmul.f32 %v994, %v996
    %v998 = vadd.f32 %v994, %v997
    %vm999 = vweird.f32 %v962
    %vm1000 = vweird.f32 %v994
    %vm1001 = vmor %vm999, %vm1000
    %v1002 = vsel %vm1001, %v994, %v998
    %v1003 = vand.u32 2147483647, %v962
    %vm1004 = vcmp.eq.f32.partialorder %v1003, 8.507059e+37
    %v1005 = vand.u32 %v962, 2147483648
    %v1006 = vor.u32 1.1754944e-38, %v1005
    %v1007 = vsel %vm1004, %v1006, %v1002
    %v1008 = vmul.f32 1.0, %v1007
    %v1009 = vrcp.pop %v963
    %v1010 = vmul.f32 %v963, %v1009
    %v1011 = vsub.f32 1.0, %v1010
    %v1012 = vmul.f32 %v1009, %v1011
    %v1013 = vadd.f32 %v1009, %v1012
    %vm1014 = vweird.f32 %v963
    %vm1015 = vweird.f32 %v1009
    %vm1016 = vmor %vm1014, %vm1015
    %v1017 = vsel %vm1016, %v1009, %v1013
    %v1018 = vand.u32 2147483647, %v963
    %vm1019 = vcmp.eq.f32.partialorder %v1018, 8.507059e+37
    %v1020 = vand.u32 %v963, 2147483648
    %v1021 = vor.u32 1.1754944e-38, %v1020
    %v1022 = vsel %vm1019, %v1021, %v1017
    %v1023 = vmul.f32 1.0, %v1022
    %v1024 = vmul.f32 %v916, %v978
    %v1025 = vmul.f32 %v944, %v993
    %v1026 = vmul.f32 %v918, %v1008
    %v1027 = vmul.f32 %v946, %v1023
    %v1028 = vpack.c.bf16 %v1026, %v1024
    %v1029 = vpack.c.bf16 %v1027, %v1025
    %v1030 = vld [vmem:[#allocation5] sm:$0xff]
    %v1031 = vld [vmem:[#allocation5 + $0x8] sm:$0xff]
    %v1032 = vld [vmem:[#allocation5 + $0x10] sm:$0xff]
    %v1033 = vld [vmem:[#allocation5 + $0x18] sm:$0xff]
    %v1034 = vld [vmem:[#allocation5 + $0x20] sm:$0xff]
    %v1035 = vld [vmem:[#allocation5 + $0x28] sm:$0xff]
    %v1036 = vld [vmem:[#allocation5 + $0x30] sm:$0xff]
    %v1037 = vld [vmem:[#allocation5 + $0x38] sm:$0xff]
    %v1038 = vld [vmem:[#allocation5 + $0x40] sm:$0xff]
    %v1039 = vld [vmem:[#allocation5 + $0x48] sm:$0xff]
    %v1040 = vld [vmem:[#allocation5 + $0x50] sm:$0xff]
    %v1041 = vld [vmem:[#allocation5 + $0x58] sm:$0xff]
    %v1042 = vld [vmem:[#allocation5 + $0x60] sm:$0xff]
    %v1043 = vld [vmem:[#allocation5 + $0x68] sm:$0xff]
    %v1044 = vld [vmem:[#allocation5 + $0x70] sm:$0xff]
    %v1045 = vld [vmem:[#allocation5 + $0x78] sm:$0xff]
    %v1046 = vld [vmem:[#allocation5 + $0x80] sm:$0xff]
    %v1047 = vld [vmem:[#allocation5 + $0x88] sm:$0xff]
    %v1048 = vld [vmem:[#allocation5 + $0x90] sm:$0xff]
    %v1049 = vld [vmem:[#allocation5 + $0x98] sm:$0xff]
    %v1050 = vld [vmem:[#allocation5 + $0xa0] sm:$0xff]
    %v1051 = vld [vmem:[#allocation5 + $0xa8] sm:$0xff]
    %v1052 = vld [vmem:[#allocation5 + $0xb0] sm:$0xff]
    %v1053 = vld [vmem:[#allocation5 + $0xb8] sm:$0xff]
    %v1054 = vld [vmem:[#allocation5 + $0xc0] sm:$0xff]
    %v1055 = vld [vmem:[#allocation5 + $0xc8] sm:$0xff]
    %v1056 = vld [vmem:[#allocation5 + $0xd0] sm:$0xff]
    %v1057 = vld [vmem:[#allocation5 + $0xd8] sm:$0xff]
    %v1058 = vld [vmem:[#allocation5 + $0xe0] sm:$0xff]
    %v1059 = vld [vmem:[#allocation5 + $0xe8] sm:$0xff]
    %v1060 = vld [vmem:[#allocation5 + $0xf0] sm:$0xff]
    %v1061 = vld [vmem:[#allocation5 + $0xf8] sm:$0xff]
    %v1062 = vld [vmem:[%s5] sm:$0x3]
    %v1064 = vperm.slane %v1062, 0
    %v1065 = vperm.slane %v1062, 1
    %v1100 = vunpack.c.l.b16 %v1030
    %v1101 = vunpack.c.h.b16 %v1030
    %v1102 = vunpack.c.l.b16 %v1031
    %v1103 = vunpack.c.h.b16 %v1031
    %v1104 = vunpack.c.l.b16 %v1032
    %v1105 = vunpack.c.h.b16 %v1032
    %v1106 = vunpack.c.l.b16 %v1033
    %v1107 = vunpack.c.h.b16 %v1033
    %v1108 = vunpack.c.l.b16 %v1034
    %v1109 = vunpack.c.h.b16 %v1034
    %v1110 = vunpack.c.l.b16 %v1035
    %v1111 = vunpack.c.h.b16 %v1035
    %v1112 = vunpack.c.l.b16 %v1036
    %v1113 = vunpack.c.h.b16 %v1036
    %v1114 = vunpack.c.l.b16 %v1037
    %v1115 = vunpack.c.h.b16 %v1037
    %v1116 = vunpack.c.l.b16 %v1038
    %v1117 = vunpack.c.h.b16 %v1038
    %v1118 = vunpack.c.l.b16 %v1039
    %v1119 = vunpack.c.h.b16 %v1039
    %v1120 = vunpack.c.l.b16 %v1040
    %v1121 = vunpack.c.h.b16 %v1040
    %v1122 = vunpack.c.l.b16 %v1041
    %v1123 = vunpack.c.h.b16 %v1041
    %v1124 = vunpack.c.l.b16 %v1042
    %v1125 = vunpack.c.h.b16 %v1042
    %v1126 = vunpack.c.l.b16 %v1043
    %v1127 = vunpack.c.h.b16 %v1043
    %v1128 = vunpack.c.l.b16 %v1044
    %v1129 = vunpack.c.h.b16 %v1044
    %v1130 = vunpack.c.l.b16 %v1045
    %v1131 = vunpack.c.h.b16 %v1045
    %v1132 = vunpack.c.l.b16 %v1046
    %v1133 = vunpack.c.h.b16 %v1046
    %v1134 = vunpack.c.l.b16 %v1047
    %v1135 = vunpack.c.h.b16 %v1047
    %v1136 = vunpack.c.l.b16 %v1048
    %v1137 = vunpack.c.h.b16 %v1048
    %v1138 = vunpack.c.l.b16 %v1049
    %v1139 = vunpack.c.h.b16 %v1049
    %v1140 = vunpack.c.l.b16 %v1050
    %v1141 = vunpack.c.h.b16 %v1050
    %v1142 = vunpack.c.l.b16 %v1051
    %v1143 = vunpack.c.h.b16 %v1051
    %v1144 = vunpack.c.l.b16 %v1052
    %v1145 = vunpack.c.h.b16 %v1052
    %v1146 = vunpack.c.l.b16 %v1053
    %v1147 = vunpack.c.h.b16 %v1053
    %v1148 = vunpack.c.l.b16 %v1054
    %v1149 = vunpack.c.h.b16 %v1054
    %v1150 = vunpack.c.l.b16 %v1055
    %v1151 = vunpack.c.h.b16 %v1055
    %v1152 = vunpack.c.l.b16 %v1056
    %v1153 = vunpack.c.h.b16 %v1056
    %v1154 = vunpack.c.l.b16 %v1057
    %v1155 = vunpack.c.h.b16 %v1057
    %v1156 = vunpack.c.l.b16 %v1058
    %v1157 = vunpack.c.h.b16 %v1058
    %v1158 = vunpack.c.l.b16 %v1059
    %v1159 = vunpack.c.h.b16 %v1059
    %v1160 = vunpack.c.l.b16 %v1060
    %v1161 = vunpack.c.h.b16 %v1060
    %v1162 = vunpack.c.l.b16 %v1061
    %v1163 = vunpack.c.h.b16 %v1061
    %v1164 = vpack.c.b16 %v1102, %v1100
    %v1165 = vpack.c.b16 %v1103, %v1101
    %v1166 = vpack.c.b16 %v1106, %v1104
    %v1167 = vpack.c.b16 %v1107, %v1105
    %v1168 = vpack.c.b16 %v1110, %v1108
    %v1169 = vpack.c.b16 %v1111, %v1109
    %v1170 = vpack.c.b16 %v1114, %v1112
    %v1171 = vpack.c.b16 %v1115, %v1113
    %v1172 = vpack.c.b16 %v1118, %v1116
    %v1173 = vpack.c.b16 %v1119, %v1117
    %v1174 = vpack.c.b16 %v1122, %v1120
    %v1175 = vpack.c.b16 %v1123, %v1121
    %v1176 = vpack.c.b16 %v1126, %v1124
    %v1177 = vpack.c.b16 %v1127, %v1125
    %v1178 = vpack.c.b16 %v1130, %v1128
    %v1179 = vpack.c.b16 %v1131, %v1129
    %v1180 = vpack.c.b16 %v1134, %v1132
    %v1181 = vpack.c.b16 %v1135, %v1133
    %v1182 = vpack.c.b16 %v1138, %v1136
    %v1183 = vpack.c.b16 %v1139, %v1137
    %v1184 = vpack.c.b16 %v1142, %v1140
    %v1185 = vpack.c.b16 %v1143, %v1141
    %v1186 = vpack.c.b16 %v1146, %v1144
    %v1187 = vpack.c.b16 %v1147, %v1145
    %v1188 = vpack.c.b16 %v1150, %v1148
    %v1189 = vpack.c.b16 %v1151, %v1149
    %v1190 = vpack.c.b16 %v1154, %v1152
    %v1191 = vpack.c.b16 %v1155, %v1153
    %v1192 = vpack.c.b16 %v1158, %v1156
    %v1193 = vpack.c.b16 %v1159, %v1157
    %v1194 = vpack.c.b16 %v1162, %v1160
    %v1195 = vpack.c.b16 %v1163, %v1161
    %1228 = vmatpush.bf16.msra.mxu0 %v1178
    %1229 = vmatpush.bf16.msra.mxu0 %v1176
    %1230 = vmatpush.bf16.msra.mxu0 %v1174
    %1231 = vmatpush.bf16.msra.mxu0 %v1172
    %1232 = vmatpush.bf16.msra.mxu0 %v1170
    %1233 = vmatpush.bf16.msra.mxu0 %v1168
    %1234 = vmatpush.bf16.msra.mxu0 %v1166
    %1235 = vmatpush.bf16.msra.mxu0 %v1164
    %1236 = vmatmul.bf16.gmra.mxu0 %v1028
    %v1237 = vpop.f32.mrf.mxu0
    %v1238 = vadd.f32 %v1064, %v1237
    %v1239 = vpop.f32.mrf.mxu0
    %v1240 = vadd.f32 %v1064, %v1239
    %1241 = vdwg.mxu0
    %1242 = vmatpush.bf16.msra.mxu0 %v1194
    %1243 = vmatpush.bf16.msra.mxu0 %v1192
    %1244 = vmatpush.bf16.msra.mxu0 %v1190
    %1245 = vmatpush.bf16.msra.mxu0 %v1188
    %1246 = vmatpush.bf16.msra.mxu0 %v1186
    %1247 = vmatpush.bf16.msra.mxu0 %v1184
    %1248 = vmatpush.bf16.msra.mxu0 %v1182
    %1249 = vmatpush.bf16.msra.mxu0 %v1180
    %1250 = vmatmul.bf16.gmra.mxu0 %v1029
    %v1251 = vpop.f32.mrf.mxu0
    %v1252 = vadd.f32 %v1238, %v1251
    %v1253 = vpop.f32.mrf.mxu0
    %v1254 = vadd.f32 %v1240, %v1253
    %1255 = vdwg.mxu0
    %1256 = vmatpush.bf16.msra.mxu0 %v1179
    %1257 = vmatpush.bf16.msra.mxu0 %v1177
    %1258 = vmatpush.bf16.msra.mxu0 %v1175
    %1259 = vmatpush.bf16.msra.mxu0 %v1173
    %1260 = vmatpush.bf16.msra.mxu0 %v1171
    %1261 = vmatpush.bf16.msra.mxu0 %v1169
    %1262 = vmatpush.bf16.msra.mxu0 %v1167
    %1263 = vmatpush.bf16.msra.mxu0 %v1165
    %1264 = vmatmul.bf16.gmra.mxu0 %v1028
    %v1265 = vpop.f32.mrf.mxu0
    %v1266 = vadd.f32 %v1065, %v1265
    %v1267 = vpop.f32.mrf.mxu0
    %v1268 = vadd.f32 %v1065, %v1267
    %1269 = vdwg.mxu0
    %1270 = vmatpush.bf16.msra.mxu0 %v1195
    %1271 = vmatpush.bf16.msra.mxu0 %v1193
    %1272 = vmatpush.bf16.msra.mxu0 %v1191
    %1273 = vmatpush.bf16.msra.mxu0 %v1189
    %1274 = vmatpush.bf16.msra.mxu0 %v1187
    %1275 = vmatpush.bf16.msra.mxu0 %v1185
    %1276 = vmatpush.bf16.msra.mxu0 %v1183
    %1277 = vmatpush.bf16.msra.mxu0 %v1181
    %1278 = vmatmul.bf16.gmra.mxu0 %v1029
    %v1279 = vpop.f32.mrf.mxu0
    %v1280 = vadd.f32 %v1266, %v1279
    %v1281 = vpop.f32.mrf.mxu0
    %v1282 = vadd.f32 %v1268, %v1281
    %1283 = vdwg.mxu0
    %1284 = vst [vmem:[#allocation7] sm:$0xff] %v1252
    %1285 = vst [vmem:[#allocation7 + $0x8] sm:$0xff] %v1280
    %1286 = vst [vmem:[#allocation7 + $0x10] sm:$0xff] %v1254
    %1287 = vst [vmem:[#allocation7 + $0x18] sm:$0xff] %v1282
    // Predicated region
    $region34: #{tpu_custom_call.1} parent=1 // pred_check
      _
    $region35: #{tpu_custom_call.1} parent=1 // pred_check_branch
      %1289 = sbr.rel (0) target = $region37
    $region36: #{tpu_custom_call.1} parent=1 // pred_region
      %1291 = vsyncadd [#allocation4], 0
      %s1292 = sshll.u32 [#allocation7], 4
      %s1293 = int_to_ptr.vmem [resolvable:$true] %s1292
      %s1294 = sshll.u32 %s6, 4
      %s1295 = int_to_ptr.hbm [resolvable:$true] %s1294
      %1300 = dma.vmem_to_hbm [thread:$0]  %s1293, 512, %s1295, [#allocation4], 256, 256, 16
    $region37: #{tpu_custom_call.1} parent=1 // pred_fallthru
      _
    // Predicated region
    $region38: #{tpu_custom_call.1} parent=1 // pred_check
      _
    $region39: #{tpu_custom_call.1} parent=1 // pred_check_branch
      %1302 = sbr.rel (0) target = $region41
    $region40: #{tpu_custom_call.1} parent=1 // pred_region
      %1304 = dma.done [#allocation4], 512
    $region41: #{tpu_custom_call.1} parent=1 // pred_fallthru
      _
    %1305 = vsyncpa [#allocation3], 1
    %1306 = vsyncpa [#allocation6], 1
    %1307 = vsyncpa [#allocation4], 1

</llo_original>
